<compile_context>
chip_gen: v7x
topology: tpu7x:2x2x1
jax: 0.10.0
libtpu: 0.0.40
codegen_flags: <defaults>
</compile_context>

<pallas_src>
import functools

import jax
import jax.numpy as jnp
from jax.experimental import pallas as pl
from jax.experimental.pallas import tpu as pltpu


# --------------------------------------------------------------------------
# Device-aware sizing helpers.
# --------------------------------------------------------------------------
@functools.lru_cache(maxsize=1)
def _vmem_limit_bytes():
    """~96 MiB on 128-MiB-VMEM chips (v5e/v6e), ~48 MiB on v7x (64 MiB)."""
    cap = 64 * 1024 * 1024
    try:
        cap = int(getattr(pltpu.get_tpu_info(), "vmem_capacity_bytes", cap))
    except Exception:
        pass
    return int(min(100 * 1024 * 1024, cap * 3 // 4))


def _round_up(x, m):
    return ((x + m - 1) // m) * m


def _pick_row_tile(npad):
    for t in (512, 256, 128):
        if npad % t == 0:
            return t
    return 128   # unreachable: npad is always a multiple of 128


def _pick_k_tile(fi):
    # K (= in_features) grid axis for the projection: tile only when large
    # (residual concatenation grows fi in deeper nets).
    if fi <= 1024:
        return fi
    for t in (1024, 512, 256, 128):
        if fi % t == 0:
            return t
    return fi


def _attn_vmem_bytes(tq, tk, n_heads, f_out, wh_itemsize):
    hfo = n_heads * f_out
    dbl = 2  # BlockSpec double-buffering
    b = dbl * (tq * tk                      # adj tile (int8)
               + tk * hfo * wh_itemsize     # Wh slab (k side)
               + tq * n_heads * 4           # f1 slab (q side)
               + n_heads * tk * 4           # f2 slab (k side)
               + tq * hfo * 4)              # output block
    b += n_heads * tq * (2 + f_out) * 4     # m / l / acc scratch
    return b


def _pick_attn_tiles(npad, n_heads, f_out, wh_itemsize):
    budget = int(_vmem_limit_bytes() * 0.6)   # headroom for temporaries/spills
    tks = [t for t in (512, 256, 128) if npad % t == 0]         # lane axis: x128
    tqs = [t for t in (1024, 512, 384, 256, 192, 128) if npad % t == 0]  # x8 ok
    best_key, best = None, (128, 128)
    for tk in tks:
        for tq in tqs:
            if _attn_vmem_bytes(tq, tk, n_heads, f_out, wh_itemsize) > budget:
                continue
            # Prefer >=2 q-steps (pipelining + even 2-TC split on v7x), then
            # the largest tile area (amortizes ~0.35 us per grid step).
            key = (npad // tq >= 2, tq * tk, tq)
            if best_key is None or key > best_key:
                best_key, best = key, (tq, tk)
    return best


# --------------------------------------------------------------------------
# Kernel A: fused projection  [Wh | f1 | f2] = x @ [W_heads | W a1 | W a2]
# --------------------------------------------------------------------------
def _proj_kernel(x_ref, w_ref, wh_ref, f_ref, acc_ref, *, hfo):
    k = pl.program_id(1)

    @pl.when(k == 0)
    def _init():
        acc_ref[...] = jnp.zeros_like(acc_ref)

    acc_ref[...] += jnp.dot(x_ref[...], w_ref[...],
                            preferred_element_type=jnp.float32)

    @pl.when(k == pl.num_programs(1) - 1)
    def _finalize():
        wh_ref[...] = acc_ref[:, :hfo].astype(wh_ref.dtype)   # (tm, H*Fo)
        f_ref[...] = acc_ref[:, hfo:]                         # (tm, 2H) f32


def _projection(x, w_aug, *, hfo, wh_dtype):
    npad, fi = x.shape
    wcols = w_aug.shape[1]
    tm = _pick_row_tile(npad)
    tkk = _pick_k_tile(fi)
    kernel = functools.partial(_proj_kernel, hfo=hfo)
    return pl.pallas_call(
        kernel,
        out_shape=(jax.ShapeDtypeStruct((npad, hfo), wh_dtype),
                   jax.ShapeDtypeStruct((npad, wcols - hfo), jnp.float32)),
        grid_spec=pltpu.PrefetchScalarGridSpec(
            num_scalar_prefetch=0,
            grid=(npad // tm, fi // tkk),
            in_specs=[pl.BlockSpec((tm, tkk), lambda i, k: (i, k)),
                      pl.BlockSpec((tkk, wcols), lambda i, k: (k, 0))],
            out_specs=[pl.BlockSpec((tm, hfo), lambda i, k: (i, 0)),
                       pl.BlockSpec((tm, wcols - hfo), lambda i, k: (i, 0))],
            scratch_shapes=[pltpu.VMEM((tm, wcols), jnp.float32)]),
        compiler_params=pltpu.CompilerParams(
            dimension_semantics=("parallel", "arbitrary"),
            vmem_limit_bytes=_vmem_limit_bytes()),
    )(x, w_aug)


# --------------------------------------------------------------------------
# Kernel B: tiled masked attention + aggregation + ELU, fused over heads.
# --------------------------------------------------------------------------
def _attn_kernel(adj_ref, wh_ref, f1_ref, f2_ref, out_ref,
                 m_scr, l_scr, acc_scr, *, n_heads, f_out, lrelu_alpha):
    ki = pl.program_id(1)

    @pl.when(ki == 0)
    def _init():
        m_scr[...] = jnp.full(m_scr.shape, -jnp.inf, jnp.float32)
        l_scr[...] = jnp.zeros(l_scr.shape, jnp.float32)
        acc_scr[...] = jnp.zeros(acc_scr.shape, jnp.float32)

    # int8 edge mask compared directly (no int8->f32 unpack); decoded once per
    # (tq, tk) tile and reused by every head.
    edge = adj_ref[...] > 0
    neg_big = jnp.float32(-9e15)                      # torch "zero_vec"

    # Static unroll is fine for small H.
    # TODO(synk): for H >= 4-8 switch to lax.fori_loop(..., unroll=True) over
    # heads to bound live ranges and avoid vreg spills.
    for h in range(n_heads):
        # e[i, j] = leakyrelu(f1[i, h] + f2[h, j]); f1/f2 folded into kernel A.
        e = f1_ref[:, h:h + 1] + f2_ref[h:h + 1, :]   # (tq,1)+(1,tk)->(tq,tk)
        e = jnp.where(e > 0, e, lrelu_alpha * e)      # LeakyReLU
        s = jnp.where(edge, e, neg_big)               # mask non-edges

        # Online softmax over the kv ("arbitrary") grid axis.
        m_prev = m_scr[h]                                             # (tq, 1)
        m_new = jnp.maximum(m_prev, jnp.max(s, axis=1, keepdims=True))
        corr = jnp.exp(m_prev - m_new)
        p = jnp.exp(s - m_new)                                        # (tq, tk)
        l_scr[h] = corr * l_scr[h] + jnp.sum(p, axis=1, keepdims=True)
        wh_h = wh_ref[:, h * f_out:(h + 1) * f_out]   # (tk, Fo) static slice
        acc_scr[h] = corr * acc_scr[h] + jnp.dot(
            p.astype(wh_h.dtype), wh_h, preferred_element_type=jnp.float32)
        m_scr[h] = m_new

    @pl.when(ki == pl.num_programs(1) - 1)
    def _finalize():
        for h in range(n_heads):
            v = acc_scr[h] * pl.reciprocal(l_scr[h], approx=False)
            # ELU (concat=True default in the torch layer); expm1 avoids the
            # exp(v)-1 cancellation for small |v|.
            out_ref[:, h * f_out:(h + 1) * f_out] = jnp.where(
                v > 0, v, jnp.expm1(v)).astype(out_ref.dtype)


def _attention(adj_i8, wh, f1, f2t, lrelu_alpha, *, n_heads, f_out):
    npad = adj_i8.shape[0]
    hfo = n_heads * f_out
    tq, tk = _pick_attn_tiles(npad, n_heads, f_out,
                              jnp.dtype(wh.dtype).itemsize)
    kernel = functools.partial(_attn_kernel, n_heads=n_heads, f_out=f_out,
                               lrelu_alpha=lrelu_alpha)
    # NOTE: if xprof shows exposed DMA, sweep pipeline_mode=pl.Buffered(3) on
    # the adj / Wh / f2 (k-side) in_specs below.
    return pl.pallas_call(
        kernel,
        out_shape=jax.ShapeDtypeStruct((npad, hfo), jnp.float32),
        grid_spec=pltpu.PrefetchScalarGridSpec(
            num_scalar_prefetch=0,
            grid=(npad // tq, npad // tk),
            in_specs=[
                pl.BlockSpec((tq, tk), lambda qi, ki: (qi, ki)),       # adj i8
                pl.BlockSpec((tk, hfo), lambda qi, ki: (ki, 0)),       # Wh slab
                pl.BlockSpec((tq, n_heads), lambda qi, ki: (qi, 0)),   # f1 (q)
                pl.BlockSpec((n_heads, tk), lambda qi, ki: (0, ki)),   # f2^T (k)
            ],
            out_specs=pl.BlockSpec((tq, hfo), lambda qi, ki: (qi, 0)),
            scratch_shapes=[
                pltpu.VMEM((n_heads, tq, 1), jnp.float32),      # running max
                pltpu.VMEM((n_heads, tq, 1), jnp.float32),      # running sum
                pltpu.VMEM((n_heads, tq, f_out), jnp.float32),  # accumulator
            ]),
        compiler_params=pltpu.CompilerParams(
            dimension_semantics=("parallel", "arbitrary"),
            vmem_limit_bytes=_vmem_limit_bytes()),
    )(adj_i8, wh, f1, f2t)


# --------------------------------------------------------------------------
# One dense GAT layer (all heads fused), eval mode.
# --------------------------------------------------------------------------
def gat_layer_fused(x, adj_i8, heads, lrelu_alpha, compute_dtype=jnp.float32):
    n_heads = len(heads)
    f_out = heads[0][0].shape[1]
    hfo = n_heads * f_out

    # Fold attention vectors into the projection:  x @ (W a1) == (x W) a1.
    ws = [w for (w, _) in heads]
    wa1 = [w @ a[:f_out, :] for (w, a) in heads]          # (Fi, 1) each
    wa2 = [w @ a[f_out:, :] for (w, a) in heads]          # (Fi, 1) each
    w_aug = jnp.concatenate(ws + wa1 + wa2, axis=1)       # (Fi, H*Fo + 2H)

    # bf16 mode: cast x / w_aug once in HBM and store Wh bf16 (halves the
    # per-ki Wh refetch); logit tail f1/f2 and all accumulators stay f32.
    wh, f12 = _projection(x.astype(compute_dtype),
                          w_aug.astype(compute_dtype),
                          hfo=hfo, wh_dtype=compute_dtype)
    f1 = f12[:, :n_heads]                                 # (N, H)  q-side slab
    f2t = f12[:, n_heads:].T                              # (H, N)  lane-dense k-side

    return _attention(adj_i8, wh, f1, f2t, lrelu_alpha,
                      n_heads=n_heads, f_out=f_out)       # (N, H*Fo) f32


# --------------------------------------------------------------------------
# Parameter init (matches nn.init.xavier_uniform_(..., gain=1.414)).
# --------------------------------------------------------------------------
def _xavier_uniform(key, shape, gain=1.414):
    fan_in, fan_out = shape[0], shape[1]
    bound = gain * (6.0 / (fan_in + fan_out)) ** 0.5
    return jax.random.uniform(key, shape, jnp.float32, -bound, bound)


def init_res_multilabel_gat(key, nfeat, nclass, nheads_list, nhid_list):
    assert len(nheads_list) == len(nhid_list)
    layers = []
    in_dim = nfeat
    for l in range(len(nheads_list)):
        heads = []
        for _ in range(nheads_list[l]):
            key, kw, ka = jax.random.split(key, 3)
            heads.append((_xavier_uniform(kw, (in_dim, nhid_list[l])),
                          _xavier_uniform(ka, (2 * nhid_list[l], 1))))
        layers.append(heads)
        in_dim = nhid_list[l] * nheads_list[l]
    key, kw, ka = jax.random.split(key, 3)
    out_att = (_xavier_uniform(kw, (nhid_list[-1] * nheads_list[-1], nclass)),
               _xavier_uniform(ka, (2 * nclass, 1)))
    return {"layers": layers, "out_att": out_att}


# --------------------------------------------------------------------------
# ResMultiLabelGAT.forward (eval mode: dropout == identity).
# --------------------------------------------------------------------------
def res_multilabel_gat_forward(params, x, adj, lrelu_alpha,
                               compute_dtype=jnp.float32):
    n = x.shape[0]
    npad = _round_up(n, 128)
    if npad != n:
        # Padded rows are all-zero features with no edges; they never affect
        # real rows (masked to -9e15 -> exp underflows to 0) and are sliced
        # off at the end.
        x = jnp.pad(x, ((0, npad - n), (0, 0)))
        adj = jnp.pad(adj, ((0, npad - n), (0, npad - n)))

    adj_i8 = (adj > 0).astype(jnp.int8)   # edge mask built once, reused by all layers

    x_list = [x]
    for layer in params["layers"]:
        x_in = jnp.concatenate(x_list, axis=-1)
        x_list.append(gat_layer_fused(x_in, adj_i8, layer, lrelu_alpha,
                                      compute_dtype))
    # Faithful to the reference: out_att consumes the ORIGINAL x.
    out = gat_layer_fused(x, adj_i8, [params["out_att"]], lrelu_alpha,
                          compute_dtype)
    return out[:n]


# --------------------------------------------------------------------------
# Pure-JAX reference (correctness check only).
# --------------------------------------------------------------------------
def _gat_layer_ref(h, adj, W, a, alpha):
    wh = h @ W
    fo = W.shape[1]
    e = wh @ a[:fo, :] + (wh @ a[fo:, :]).T
    e = jnp.where(e > 0, e, alpha * e)
    att = jnp.where(adj > 0, e, -9e15)
    att = jax.nn.softmax(att, axis=1)
    hp = att @ wh
    return jnp.where(hp > 0, hp, jnp.expm1(hp))


def _forward_ref(params, x, adj, alpha):
    x_list = [x]
    for layer in params["layers"]:
        x_in = jnp.concatenate(x_list, axis=-1)
        x_out = jnp.concatenate(
            [_gat_layer_ref(x_in, adj, W, a, alpha) for (W, a) in layer],
            axis=-1)
        x_list.append(x_out)
    W_out, a_out = params["out_att"]
    return _gat_layer_ref(x, adj, W_out, a_out, alpha)


# --------------------------------------------------------------------------
if __name__ == "__main__":
    key = jax.random.PRNGKey(0)
    N, nfeat, nclass = 300, 16, 4           # N=300 exercises the pad-to-384 path
    nheads_list, nhid_list = [2], [8]       # nhid*nheads == nfeat (see NOTE)
    alpha = 0.2                             # LeakyReLU negative slope
    dropout = 0.5                           # inactive in eval mode

    k_x, k_adj, k_p = jax.random.split(key, 3)
    x = jax.random.normal(k_x, (N, nfeat), jnp.float32)
    adj = (jax.random.uniform(k_adj, (N, N)) < 0.05).astype(jnp.float32)
    adj = jnp.maximum(adj, jnp.eye(N, dtype=jnp.float32))  # self-loops

    params = init_res_multilabel_gat(k_p, nfeat, nclass, nheads_list, nhid_list)
    ref = _forward_ref(params, x, adj, alpha)

    # f32 path: exact reciprocal + expm1 -> tight check vs the reference.
    out = jax.block_until_ready(
        res_multilabel_gat_forward(params, x, adj, alpha,
                                   compute_dtype=jnp.float32))
    assert out.shape == (N, nclass)
    assert jnp.allclose(out, ref, atol=1e-3, rtol=1e-3), "f32 mismatch vs reference"

    # bf16 MXU inputs (recommended on v6e/v7x), f32 accumulation: sanity check.
    out_bf16 = jax.block_until_ready(
        res_multilabel_gat_forward(params, x, adj, alpha,
                                   compute_dtype=jnp.bfloat16))
    assert bool(jnp.all(jnp.isfinite(out_bf16)))
    assert float(jnp.max(jnp.abs(out_bf16 - ref))) < 0.5, "bf16 sanity check failed"

    print("KERNEL_OK")
</pallas_src>

<mosaic_0001>
module attributes {stable_mosaic.version = 11 : i64} {
  func.func @_proj_kernel(%arg0: i32, %arg1: i32, %arg2: memref<128x16xf32, #tpu.memory_space<vmem>>, %arg3: memref<16x20xf32, #tpu.memory_space<vmem>>, %arg4: memref<128x16xf32, #tpu.memory_space<vmem>>, %arg5: memref<128x4xf32, #tpu.memory_space<vmem>>, %arg6: memref<128x20xf32, #tpu.memory_space<vmem>>) attributes {dimension_semantics = [#tpu.dimension_semantics<parallel>, #tpu.dimension_semantics<arbitrary>], iteration_bounds = array<i64: 3, 1>, scalar_prefetch = 0 : i64, scratch_operands = 1 : i64, tpu.core_type = #tpu.core_type<tc>, window_params = [{transform_indices = @transform_0, window_bounds = array<i64: 128, 16>}, {transform_indices = @transform_1, window_bounds = array<i64: 16, 20>}, {transform_indices = @transform_2, window_bounds = array<i64: 128, 16>}, {transform_indices = @transform_3, window_bounds = array<i64: 128, 4>}]} {
    %c0_i32 = arith.constant 0 : i32
    %0 = arith.cmpi eq, %arg1, %c0_i32 : i32
    %1 = arith.extui %0 : i1 to i32
    %c0_i32_0 = arith.constant 0 : i32
    %2 = arith.cmpi ne, %1, %c0_i32_0 : i32
    scf.if %2 {
      %cst_10 = arith.constant 0.000000e+00 : f32
      %12 = vector.broadcast %cst_10 : f32 to vector<128x20xf32>
      %c0_11 = arith.constant 0 : index
      %c0_12 = arith.constant 0 : index
      %13 = vector.load %arg6[%c0_11, %c0_12] : memref<128x20xf32, #tpu.memory_space<vmem>>, vector<128x20xf32>
      tpu.vector_store %arg6[%c0_11, %c0_12], %12 {strides = array<i32>} : memref<128x20xf32, #tpu.memory_space<vmem>>, vector<128x20xf32>,
    } else {
    }
    %c0 = arith.constant 0 : index
    %c0_1 = arith.constant 0 : index
    %3 = vector.load %arg6[%c0, %c0_1] : memref<128x20xf32, #tpu.memory_space<vmem>>, vector<128x20xf32>
    %c0_2 = arith.constant 0 : index
    %c0_3 = arith.constant 0 : index
    %4 = vector.load %arg2[%c0_2, %c0_3] : memref<128x16xf32, #tpu.memory_space<vmem>>, vector<128x16xf32>
    %c0_4 = arith.constant 0 : index
    %c0_5 = arith.constant 0 : index
    %5 = vector.load %arg3[%c0_4, %c0_5] : memref<16x20xf32, #tpu.memory_space<vmem>>, vector<16x20xf32>
    %cst = arith.constant dense<0.000000e+00> : vector<128x20xf32>
    %6 = tpu.matmul %4, %5, %cst {dimension_numbers = #tpu.dot_dimension_numbers<[1], [0], [0], [1], [0, 0, 1, 1], [], []>} : vector<128x16xf32>, vector<16x20xf32>, vector<128x20xf32> -> vector<128x20xf32>
    %7 = arith.addf %3, %6 : vector<128x20xf32>
    %c0_6 = arith.constant 0 : index
    %c0_7 = arith.constant 0 : index
    %8 = vector.load %arg6[%c0_6, %c0_7] : memref<128x20xf32, #tpu.memory_space<vmem>>, vector<128x20xf32>
    tpu.vector_store %arg6[%c0_6, %c0_7], %7 {strides = array<i32>} : memref<128x20xf32, #tpu.memory_space<vmem>>, vector<128x20xf32>,
    %c0_i32_8 = arith.constant 0 : i32
    %9 = arith.cmpi eq, %arg1, %c0_i32_8 : i32
    %10 = arith.extui %9 : i1 to i32
    %c0_i32_9 = arith.constant 0 : i32
    %11 = arith.cmpi ne, %10, %c0_i32_9 : i32
    scf.if %11 {
      %c0_10 = arith.constant 0 : index
      %c0_11 = arith.constant 0 : index
      %12 = vector.load %arg6[%c0_10, %c0_11] : memref<128x20xf32, #tpu.memory_space<vmem>>, vector<128x16xf32>
      %c0_12 = arith.constant 0 : index
      %c0_13 = arith.constant 0 : index
      %13 = vector.load %arg4[%c0_12, %c0_13] : memref<128x16xf32, #tpu.memory_space<vmem>>, vector<128x16xf32>
      tpu.vector_store %arg4[%c0_12, %c0_13], %12 {strides = array<i32>} : memref<128x16xf32, #tpu.memory_space<vmem>>, vector<128x16xf32>,
      %c0_14 = arith.constant 0 : index
      %c16 = arith.constant 16 : index
      %14 = vector.load %arg6[%c0_14, %c16] : memref<128x20xf32, #tpu.memory_space<vmem>>, vector<128x4xf32>
      %c0_15 = arith.constant 0 : index
      %c0_16 = arith.constant 0 : index
      %15 = vector.load %arg5[%c0_15, %c0_16] : memref<128x4xf32, #tpu.memory_space<vmem>>, vector<128x4xf32>
      tpu.vector_store %arg5[%c0_15, %c0_16], %14 {strides = array<i32>} : memref<128x4xf32, #tpu.memory_space<vmem>>, vector<128x4xf32>,
    } else {
    }
    return
  }
  func.func @transform_0(%arg0: i32, %arg1: i32) -> (i32, i32) {
    %c0_i32 = arith.constant 0 : i32
    return %arg0, %arg1 : i32, i32
  }
  func.func @transform_1(%arg0: i32, %arg1: i32) -> (i32, i32) {
    %c0_i32 = arith.constant 0 : i32
    %c0_i32_0 = arith.constant 0 : i32
    return %arg1, %c0_i32 : i32, i32
  }
  func.func @transform_2(%arg0: i32, %arg1: i32) -> (i32, i32) {
    %c0_i32 = arith.constant 0 : i32
    %c0_i32_0 = arith.constant 0 : i32
    return %arg0, %c0_i32 : i32, i32
  }
  func.func @transform_3(%arg0: i32, %arg1: i32) -> (i32, i32) {
    %c0_i32 = arith.constant 0 : i32
    %c0_i32_0 = arith.constant 0 : i32
    return %arg0, %c0_i32 : i32, i32
  }
}

</mosaic_0001>

<llo_original>
// kernel: tpu_custom_call.1
$region0: #{tpu_custom_call.1}
  #allocation0 [shape = 'u32[]', space=smem, size = 0x4, offset = 0x4, fixed_abs, tag = 'smem constant byte address 0x4 - core index']
  #allocation1 [shape = 'u32[144,128]{1,0:T(1,128)}', space=vmem, size = 0x12000, scoped, tag = 'internal scratch']
  #allocation2 [shape = 'f32[128,20]{1,0:T(8,128)}', space=vmem, size = 0x10000, scoped, tag = 'scratch operand']
  %s0 = inlined_call_operand.vmem [shape: f32[384,16], index: 0, kind: input, shape index: {}]
  %s1 = inlined_call_operand.vmem [shape: f32[16,20], index: 1, kind: input, shape index: {}]
  %s2 = inlined_call_operand.vmem [shape: f32[384,16], index: 2, kind: output, shape index: {0}]
  %s3 = inlined_call_operand.vmem [shape: f32[384,4], index: 3, kind: output, shape index: {1}]
  %4 = xla_tuple %s2, %s3
  %s5 = sld [smem:[#allocation0]]
  $region57: #{tpu_custom_call.1} parent=0
    _
  %s7 = ssub.s32 1, %s5
  %s8 = scalar_select 0, %s7, %s5
  loop: start=0, step=1, limit=5
  $region2: #{tpu_custom_call.1} parent=0 // loop_pre_header
    _
  $region3: #{tpu_custom_call.1} parent=0 // loop_header
    %s10 = sphi 0, %s14
    %p11 = scmp.ge.s32.totalorder %s10, 5
    %s17 = sphi 0, %s29
    %s18 = sphi 0, %s25
    %s19 = sphi 0, %s17
    %s20 = sphi 0, %s18
    %s21 = sphi 0, %s19
    %s22 = sphi 0, %s20
    %s34 = sphi 0, %s36
    %s37 = sphi 0, %s34
    %s38 = sphi 0, %s37
    %s54 = sphi 0, %s38
    %s60 = sphi 0, %s62
    %s63 = sphi 0, %s60
    %s64 = sphi 0, %s63
    %s80 = sphi 0, %s64
    %s86 = sphi 0, %s88
    %s89 = sphi 0, %s86
    %s90 = sphi 0, %s89
    %s106 = sphi 0, %s90
    %s112 = sphi 0, %s114
    %s115 = sphi 0, %s112
    %s116 = sphi 0, %s115
    %s132 = sphi 0, %s116
  $region4: #{tpu_custom_call.1} parent=0 // loop_header_branch
    %13 = sbr.rel (%p11) target = $region8
  $region5: #{tpu_custom_call.1} parent=0 // loop_body
    %s15 = ssub.s32 %s10, 1
    %s16 = ssub.s32 %s10, 2
    %s23 = sadd.s32 1, %s18
    %p24 = scmp.ge.s32.totalorder %s23, 1
    %s25 = scalar_select %p24, 0, %s23
    %s26 = sadd.s32 1, %s17
    %s27 = scalar_select %p24, %s26, %s17
    %p28 = scmp.ge.s32.totalorder %s27, 3
    %s29 = scalar_select %p28, 0, %s27
    %s30 = ssub.s32 %s17, %s29
    %s31 = ssub.s32 %s18, %s25
    %s32 = sor.u32 %s30, %s31
    %p33 = scmp.eq.s32.totalorder %s32, 0
    %s35 = sadd.s32 %s34, 1
    %s36 = scalar_select %p33, %s34, %s35
    %p39 = pneg %p33
    %p40 = scmp.eq.s32.totalorder %s10, 2
    %p41 = por %p39, %p40
    %p42 = scmp.ne.s32.totalorder %s34, %s37
    %p43 = scmp.eq.s32.totalorder %s10, 0
    %p44 = por %p42, %p43
    %p45 = scmp.ne.s32.totalorder %s34, %s37
    %p46 = scmp.eq.s32.totalorder %s15, 2
    %p47 = por %p45, %p46
    %p48 = scmp.ne.s32.totalorder %s37, %s38
    %p49 = scmp.eq.s32.totalorder %s15, 0
    %p50 = por %p48, %p49
    %p51 = scmp.ne.s32.totalorder %s37, %s38
    %p52 = scmp.eq.s32.totalorder %s16, 2
    %p53 = por %p51, %p52
    %p55 = scmp.ne.s32.totalorder %s38, %s54
    %p56 = scmp.eq.s32.totalorder %s16, 0
    %p57 = por %p55, %p56
    %s58 = ssub.s32 %s18, %s25
    %p59 = scmp.eq.s32.totalorder %s58, 0
    %s61 = sadd.s32 %s60, 1
    %s62 = scalar_select %p59, %s60, %s61
    %p65 = pneg %p59
    %p66 = scmp.eq.s32.totalorder %s10, 2
    %p67 = por %p65, %p66
    %p68 = scmp.ne.s32.totalorder %s60, %s63
    %p69 = scmp.eq.s32.totalorder %s10, 0
    %p70 = por %p68, %p69
    %p71 = scmp.ne.s32.totalorder %s60, %s63
    %p72 = scmp.eq.s32.totalorder %s15, 2
    %p73 = por %p71, %p72
    %p74 = scmp.ne.s32.totalorder %s63, %s64
    %p75 = scmp.eq.s32.totalorder %s15, 0
    %p76 = por %p74, %p75
    %p77 = scmp.ne.s32.totalorder %s63, %s64
    %p78 = scmp.eq.s32.totalorder %s16, 2
    %p79 = por %p77, %p78
    %p81 = scmp.ne.s32.totalorder %s64, %s80
    %p82 = scmp.eq.s32.totalorder %s16, 0
    %p83 = por %p81, %p82
    %s84 = ssub.s32 %s17, %s29
    %p85 = scmp.eq.s32.totalorder %s84, 0
    %s87 = sadd.s32 %s86, 1
    %s88 = scalar_select %p85, %s86, %s87
    %p91 = pneg %p85
    %p92 = scmp.eq.s32.totalorder %s10, 2
    %p93 = por %p91, %p92
    %p94 = scmp.ne.s32.totalorder %s86, %s89
    %p95 = scmp.eq.s32.totalorder %s10, 0
    %p96 = por %p94, %p95
    %p97 = scmp.ne.s32.totalorder %s86, %s89
    %p98 = scmp.eq.s32.totalorder %s15, 2
    %p99 = por %p97, %p98
    %p100 = scmp.ne.s32.totalorder %s89, %s90
    %p101 = scmp.eq.s32.totalorder %s15, 0
    %p102 = por %p100, %p101
    %p103 = scmp.ne.s32.totalorder %s89, %s90
    %p104 = scmp.eq.s32.totalorder %s16, 2
    %p105 = por %p103, %p104
    %p107 = scmp.ne.s32.totalorder %s90, %s106
    %p108 = scmp.eq.s32.totalorder %s16, 0
    %p109 = por %p107, %p108
    %s110 = ssub.s32 %s17, %s29
    %p111 = scmp.eq.s32.totalorder %s110, 0
    %s113 = sadd.s32 %s112, 1
    %s114 = scalar_select %p111, %s112, %s113
    %p117 = pneg %p111
    %p118 = scmp.eq.s32.totalorder %s10, 2
    %p119 = por %p117, %p118
    %p120 = scmp.ne.s32.totalorder %s112, %s115
    %p121 = scmp.eq.s32.totalorder %s10, 0
    %p122 = por %p120, %p121
    %p123 = scmp.ne.s32.totalorder %s112, %s115
    %p124 = scmp.eq.s32.totalorder %s15, 2
    %p125 = por %p123, %p124
    %p126 = scmp.ne.s32.totalorder %s115, %s116
    %p127 = scmp.eq.s32.totalorder %s15, 0
    %p128 = por %p126, %p127
    %p129 = scmp.ne.s32.totalorder %s115, %s116
    %p130 = scmp.eq.s32.totalorder %s16, 2
    %p131 = por %p129, %p130
    %p133 = scmp.ne.s32.totalorder %s116, %s132
    %p134 = scmp.eq.s32.totalorder %s16, 0
    %p135 = por %p133, %p134
    %p136 = scmp.le.s32.totalorder 1, %s10
    %p137 = scmp.lt.s32.totalorder %s10, 4
    %p138 = pnand %p136, %p137
    %p139 = pneg %p138
    // Predicated region
    $region9: #{tpu_custom_call.1} parent=5 // pred_check
      _
    $region10: #{tpu_custom_call.1} parent=5 // pred_check_branch
      %141 = sbr.rel (%p138) target = $region12
    $region11: #{tpu_custom_call.1} parent=5 // pred_region
      %s142 = ssub.s32 %s10, 1
      // Predicated region
      $region13: #{tpu_custom_call.1} parent=11 // pred_check
        %p143 = pneg %p76
      $region14: #{tpu_custom_call.1} parent=11 // pred_check_branch
        %145 = sbr.rel (%p143) target = $region16
      $region15: #{tpu_custom_call.1} parent=11 // pred_region
        %s146 = smul.u32 2, %s20
        %p147 = scmp.lt.s32.totalorder %s146, 1
        %s148 = scalar_select %p147, %s146, 1
        %s149 = smul.addr %s148, 8
        %s150 = scalar_lea.vmem %s1, %s149
        %s151 = smul.u32 2, %s20
      $region16: #{tpu_custom_call.1} parent=11 // pred_fallthru
        _
    $region12: #{tpu_custom_call.1} parent=5 // pred_fallthru
      _
    %p152 = scmp.lt.s32.totalorder %s10, 3
    // Predicated region
    $region17: #{tpu_custom_call.1} parent=5 // pred_check
      %p153 = pneg %p152
    $region18: #{tpu_custom_call.1} parent=5 // pred_check_branch
      %155 = sbr.rel (%p153) target = $region20
    $region19: #{tpu_custom_call.1} parent=5 // pred_region
      // Predicated region
      $region21: #{tpu_custom_call.1} parent=19 // pred_check
        %p156 = pneg %p44
      $region22: #{tpu_custom_call.1} parent=19 // pred_check_branch
        %158 = sbr.rel (%p156) target = $region24
      $region23: #{tpu_custom_call.1} parent=19 // pred_region
        %s159 = smul.u32 16, %s17
        %p160 = scmp.lt.s32.totalorder %s159, 47
        %s161 = scalar_select %p160, %s159, 47
        %p162 = scmp.lt.s32.totalorder %s18, 0
        %s163 = scalar_select %p162, %s18, 0
        %s164 = sadd.s32 %s163, %s161
        %s165 = smul.addr %s164, 8
        %s166 = scalar_lea.vmem %s0, %s165
        %s167 = smul.u32 16, %s17
      $region24: #{tpu_custom_call.1} parent=19 // pred_fallthru
        _
    $region20: #{tpu_custom_call.1} parent=5 // pred_fallthru
      _
    %p168 = scmp.le.s32.totalorder 1, %s10
    %p169 = scmp.lt.s32.totalorder %s10, 4
    %p170 = pnand %p168, %p169
    %p171 = pneg %p170
    // Predicated region
    $region25: #{tpu_custom_call.1} parent=5 // pred_check
      _
    $region26: #{tpu_custom_call.1} parent=5 // pred_check_branch
      %173 = sbr.rel (%p170) target = $region28
    $region27: #{tpu_custom_call.1} parent=5 // pred_region
      %s174 = ssub.s32 %s10, 1
      %s175 = smul.u32 16, %s19
      %p176 = scmp.lt.s32.totalorder %s175, 47
      %s177 = scalar_select %p176, %s175, 47
      %p178 = scmp.lt.s32.totalorder %s20, 0
      %s179 = scalar_select %p178, %s20, 0
      %s180 = sadd.s32 %s179, %s177
      %s181 = smul.addr %s180, 8
      %s182 = scalar_lea.vmem %s0, %s181
      %p183 = pneg %p50
      %p184 = pneg %p47
      %s185 = smul.u32 2, %s20
      %p186 = scmp.lt.s32.totalorder %s185, 1
      %s187 = scalar_select %p186, %s185, 1
      %s188 = smul.addr %s187, 8
      %s189 = scalar_lea.vmem %s1, %s188
      %p190 = pneg %p76
      %p191 = pneg %p73
      %p192 = pneg %p102
      %p193 = pneg %p99
      %s194 = smul.u32 16, %s19
      %p195 = scmp.lt.s32.totalorder %s194, 47
      %s196 = scalar_select %p195, %s194, 47
      %s197 = smul.addr %s196, 8
      %s198 = scalar_lea.vmem %s2, %s197
      %p199 = pneg %p128
      %p200 = pneg %p125
      %s201 = smul.u32 16, %s19
      %p202 = scmp.lt.s32.totalorder %s201, 47
      %s203 = scalar_select %p202, %s201, 47
      %s204 = smul.addr %s203, 8
      %s205 = scalar_lea.vmem %s3, %s204
      %s206 = smul.u32 16, %s19
      %p207 = scmp.lt.s32.totalorder %s206, 47
      %s208 = scalar_select %p207, %s206, 47
      %p209 = scmp.lt.s32.totalorder %s20, 0
      %s210 = scalar_select %p209, %s20, 0
      %s211 = sadd.s32 %s210, %s208
      %s212 = smul.addr %s211, 8
      %s213 = scalar_lea.vmem %s0, %s212
      %s214 = smul.u32 16, %s19
      %s215 = smul.u32 2, %s20
      %p216 = scmp.lt.s32.totalorder %s215, 1
      %s217 = scalar_select %p216, %s215, 1
      %s218 = smul.addr %s217, 8
      %s219 = scalar_lea.vmem %s1, %s218
      %s220 = smul.u32 2, %s20
      %s221 = smul.u32 16, %s19
      %p222 = scmp.lt.s32.totalorder %s221, 47
      %s223 = scalar_select %p222, %s221, 47
      %s224 = smul.addr %s223, 8
      %s225 = scalar_lea.vmem %s2, %s224
      %s226 = smul.u32 16, %s19
      %s227 = smul.u32 16, %s19
      %p228 = scmp.lt.s32.totalorder %s227, 47
      %s229 = scalar_select %p228, %s227, 47
      %s230 = smul.addr %s229, 8
      %s231 = scalar_lea.vmem %s3, %s230
      %s232 = smul.u32 16, %s19
      %p233 = scmp.eq.s32.totalorder %s20, 0
      // Predicated region
      $region29: #{tpu_custom_call.1} parent=27 // pred_check
        %p234 = pneg %p233
      $region30: #{tpu_custom_call.1} parent=27 // pred_check_branch
        %236 = sbr.rel (%p234) target = $region32
      $region31: #{tpu_custom_call.1} parent=27 // pred_region
        %vm237 = vcmask 162816
        %238 = vst.msk [vmem:[#allocation2] sm:$0xff] %vm237, 0.0
        %239 = vst.msk [vmem:[#allocation2 + $0x8] sm:$0xff] %vm237, 0.0
        %240 = vst.msk [vmem:[#allocation2 + $0x10] sm:$0xff] %vm237, 0.0
        %241 = vst.msk [vmem:[#allocation2 + $0x18] sm:$0xff] %vm237, 0.0
        %242 = vst.msk [vmem:[#allocation2 + $0x20] sm:$0xff] %vm237, 0.0
        %243 = vst.msk [vmem:[#allocation2 + $0x28] sm:$0xff] %vm237, 0.0
        %244 = vst.msk [vmem:[#allocation2 + $0x30] sm:$0xff] %vm237, 0.0
        %245 = vst.msk [vmem:[#allocation2 + $0x38] sm:$0xff] %vm237, 0.0
        %246 = vst.msk [vmem:[#allocation2 + $0x40] sm:$0xff] %vm237, 0.0
        %247 = vst.msk [vmem:[#allocation2 + $0x48] sm:$0xff] %vm237, 0.0
        %248 = vst.msk [vmem:[#allocation2 + $0x50] sm:$0xff] %vm237, 0.0
        %249 = vst.msk [vmem:[#allocation2 + $0x58] sm:$0xff] %vm237, 0.0
        %250 = vst.msk [vmem:[#allocation2 + $0x60] sm:$0xff] %vm237, 0.0
        %251 = vst.msk [vmem:[#allocation2 + $0x68] sm:$0xff] %vm237, 0.0
        %252 = vst.msk [vmem:[#allocation2 + $0x70] sm:$0xff] %vm237, 0.0
        %253 = vst.msk [vmem:[#allocation2 + $0x78] sm:$0xff] %vm237, 0.0
      $region32: #{tpu_custom_call.1} parent=27 // pred_fallthru
        _
      %v254 = vld [vmem:[#allocation2] sm:$0xff]
      %v255 = vld [vmem:[#allocation2 + $0x8] sm:$0xff]
      %v256 = vld [vmem:[#allocation2 + $0x10] sm:$0xff]
      %v257 = vld [vmem:[#allocation2 + $0x18] sm:$0xff]
      %v258 = vld [vmem:[#allocation2 + $0x20] sm:$0xff]
      %v259 = vld [vmem:[#allocation2 + $0x28] sm:$0xff]
      %v260 = vld [vmem:[#allocation2 + $0x30] sm:$0xff]
      %v261 = vld [vmem:[#allocation2 + $0x38] sm:$0xff]
      %v262 = vld [vmem:[#allocation2 + $0x40] sm:$0xff]
      %v263 = vld [vmem:[#allocation2 + $0x48] sm:$0xff]
      %v264 = vld [vmem:[#allocation2 + $0x50] sm:$0xff]
      %v265 = vld [vmem:[#allocation2 + $0x58] sm:$0xff]
      %v266 = vld [vmem:[#allocation2 + $0x60] sm:$0xff]
      %v267 = vld [vmem:[#allocation2 + $0x68] sm:$0xff]
      %v268 = vld [vmem:[#allocation2 + $0x70] sm:$0xff]
      %v269 = vld [vmem:[#allocation2 + $0x78] sm:$0xff]
      %v270 = vld [vmem:[%s213] sm:$0xff]
      %v271 = vld [vmem:[%s213 + $0x8] sm:$0xff]
      %v272 = vld [vmem:[%s213 + $0x10] sm:$0xff]
      %v273 = vld [vmem:[%s213 + $0x18] sm:$0xff]
      %v274 = vld [vmem:[%s213 + $0x20] sm:$0xff]
      %v275 = vld [vmem:[%s213 + $0x28] sm:$0xff]
      %v276 = vld [vmem:[%s213 + $0x30] sm:$0xff]
      %v277 = vld [vmem:[%s213 + $0x38] sm:$0xff]
      %v278 = vld [vmem:[%s213 + $0x40] sm:$0xff]
      %v279 = vld [vmem:[%s213 + $0x48] sm:$0xff]
      %v280 = vld [vmem:[%s213 + $0x50] sm:$0xff]
      %v281 = vld [vmem:[%s213 + $0x58] sm:$0xff]
      %v282 = vld [vmem:[%s213 + $0x60] sm:$0xff]
      %v283 = vld [vmem:[%s213 + $0x68] sm:$0xff]
      %v284 = vld [vmem:[%s213 + $0x70] sm:$0xff]
      %v285 = vld [vmem:[%s213 + $0x78] sm:$0xff]
      %v286 = vld [vmem:[%s219] sm:$0xff]
      %v287 = vld [vmem:[%s219 + $0x8] sm:$0xff]
      %vm288 = vcmask 130048
      %v290 = vsel %vm288, %v270, 0
      %v293 = vsel %vm288, %v271, 0
      %v296 = vsel %vm288, %v272, 0
      %v299 = vsel %vm288, %v273, 0
      %v302 = vsel %vm288, %v274, 0
      %v305 = vsel %vm288, %v275, 0
      %v308 = vsel %vm288, %v276, 0
      %v311 = vsel %vm288, %v277, 0
      %v314 = vsel %vm288, %v278, 0
      %v317 = vsel %vm288, %v279, 0
      %v320 = vsel %vm288, %v280, 0
      %v323 = vsel %vm288, %v281, 0
      %v326 = vsel %vm288, %v282, 0
      %v329 = vsel %vm288, %v283, 0
      %v332 = vsel %vm288, %v284, 0
      %v335 = vsel %vm288, %v285, 0
      %337 = vmatprep.subr.mxu0 0.0
      %338 = vmatpush1.msra.mxu0 %v286
      %339 = vmatprep.subr.mxu0 0.0
      %340 = vmatpush1.msra.mxu0 %v287
      %341 = vmatprep.subr.mxu0 0.0
      %342 = vmatpush1.msra.mxu0 0.0
      %343 = vmatprep.subr.mxu0 0.0
      %344 = vmatpush1.msra.mxu0 0.0
      %345 = vmatprep.subr.mxu0 0.0
      %346 = vmatpush1.msra.mxu0 0.0
      %347 = vmatprep.subr.mxu0 0.0
      %348 = vmatpush1.msra.mxu0 0.0
      %349 = vmatprep.subr.mxu0 0.0
      %350 = vmatpush1.msra.mxu0 0.0
      %351 = vmatprep.subr.mxu0 0.0
      %352 = vmatpush1.msra.mxu0 0.0
      %353 = vmatprep.subr.mxu0 0.0
      %354 = vmatpush1.msra.mxu0 0.0
      %355 = vmatprep.subr.mxu0 0.0
      %356 = vmatpush1.msra.mxu0 0.0
      %357 = vmatprep.subr.mxu0 0.0
      %358 = vmatpush1.msra.mxu0 0.0
      %359 = vmatprep.subr.mxu0 0.0
      %360 = vmatpush1.msra.mxu0 0.0
      %361 = vmatprep.subr.mxu0 0.0
      %362 = vmatpush1.msra.mxu0 0.0
      %363 = vmatprep.subr.mxu0 0.0
      %364 = vmatpush1.msra.mxu0 0.0
      %365 = vmatprep.subr.mxu0 0.0
      %366 = vmatpush1.msra.mxu0 0.0
      %367 = vmatprep.subr.mxu0 0.0
      %368 = vmatpush1.msra.mxu0 0.0
      %369 = vmatprep.subr.mxu0 0.0
      %370 = vmatpush1.msra.mxu0 0.0
      %371 = vmatprep.subr.mxu0 0.0
      %372 = vmatpush1.msra.mxu0 0.0
      %373 = vmatprep.subr.mxu0 0.0
      %374 = vmatpush1.msra.mxu0 0.0
      %375 = vmatprep.subr.mxu0 0.0
      %376 = vmatpush1.msra.mxu0 0.0
      %377 = vmatprep.subr.mxu0 0.0
      %378 = vmatpush1.msra.mxu0 0.0
      %379 = vmatprep.subr.mxu0 0.0
      %380 = vmatpush1.msra.mxu0 0.0
      %381 = vmatprep.subr.mxu0 0.0
      %382 = vmatpush1.msra.mxu0 0.0
      %383 = vmatprep.subr.mxu0 0.0
      %384 = vmatpush1.msra.mxu0 0.0
      %385 = vmatprep.subr.mxu0 0.0
      %386 = vmatpush1.msra.mxu0 0.0
      %387 = vmatprep.subr.mxu0 0.0
      %388 = vmatpush1.msra.mxu0 0.0
      %389 = vmatprep.subr.mxu0 0.0
      %390 = vmatpush1.msra.mxu0 0.0
      %391 = vmatprep.subr.mxu0 0.0
      %392 = vmatpush1.msra.mxu0 0.0
      %393 = vmatprep.subr.mxu0 0.0
      %394 = vmatpush1.msra.mxu0 0.0
      %395 = vmatprep.subr.mxu0 0.0
      %396 = vmatpush1.msra.mxu0 0.0
      %397 = vmatprep.subr.mxu0 0.0
      %398 = vmatpush1.msra.mxu0 0.0
      %399 = vmatprep.subr.mxu0 0.0
      %400 = vmatpush1.msra.mxu0 0.0
      %401 = vmatprep.mubr.f32.mxu0 0.0
      %402 = vmatmul.mubr.f32.gmra.mrb[0].mxu0 %v290
      %v403 = vpop.f32.mrb[0].mxu0
      %v404 = vadd.f32 0.0, %v403
      %v405 = vpop.f32.mrb[0].mxu0
      %406 = vmatprep.mubr.f32.mxu0 0.0
      %407 = vmatmul.mubr.f32.gmra.mrb[0].mxu0 %v293
      %v408 = vpop.f32.mrb[0].mxu0
      %v409 = vadd.f32 0.0, %v408
      %v410 = vpop.f32.mrb[0].mxu0
      %411 = vmatprep.mubr.f32.mxu0 0.0
      %412 = vmatmul.mubr.f32.gmra.mrb[0].mxu0 %v296
      %v413 = vpop.f32.mrb[0].mxu0
      %v414 = vadd.f32 0.0, %v413
      %v415 = vpop.f32.mrb[0].mxu0
      %416 = vmatprep.mubr.f32.mxu0 0.0
      %417 = vmatmul.mubr.f32.gmra.mrb[0].mxu0 %v299
      %v418 = vpop.f32.mrb[0].mxu0
      %v419 = vadd.f32 0.0, %v418
      %v420 = vpop.f32.mrb[0].mxu0
      %421 = vmatprep.mubr.f32.mxu0 0.0
      %422 = vmatmul.mubr.f32.gmra.mrb[0].mxu0 %v302
      %v423 = vpop.f32.mrb[0].mxu0
      %v424 = vadd.f32 0.0, %v423
      %v425 = vpop.f32.mrb[0].mxu0
      %426 = vmatprep.mubr.f32.mxu0 0.0
      %427 = vmatmul.mubr.f32.gmra.mrb[0].mxu0 %v305
      %v428 = vpop.f32.mrb[0].mxu0
      %v429 = vadd.f32 0.0, %v428
      %v430 = vpop.f32.mrb[0].mxu0
      %431 = vmatprep.mubr.f32.mxu0 0.0
      %432 = vmatmul.mubr.f32.gmra.mrb[0].mxu0 %v308
      %v433 = vpop.f32.mrb[0].mxu0
      %v434 = vadd.f32 0.0, %v433
      %v435 = vpop.f32.mrb[0].mxu0
      %436 = vmatprep.mubr.f32.mxu0 0.0
      %437 = vmatmul.mubr.f32.gmra.mrb[0].mxu0 %v311
      %v438 = vpop.f32.mrb[0].mxu0
      %v439 = vadd.f32 0.0, %v438
      %v440 = vpop.f32.mrb[0].mxu0
      %441 = vmatprep.mubr.f32.mxu0 0.0
      %442 = vmatmul.mubr.f32.gmra.mrb[0].mxu0 %v314
      %v443 = vpop.f32.mrb[0].mxu0
      %v444 = vadd.f32 0.0, %v443
      %v445 = vpop.f32.mrb[0].mxu0
      %446 = vmatprep.mubr.f32.mxu0 0.0
      %447 = vmatmul.mubr.f32.gmra.mrb[0].mxu0 %v317
      %v448 = vpop.f32.mrb[0].mxu0
      %v449 = vadd.f32 0.0, %v448
      %v450 = vpop.f32.mrb[0].mxu0
      %451 = vmatprep.mubr.f32.mxu0 0.0
      %452 = vmatmul.mubr.f32.gmra.mrb[0].mxu0 %v320
      %v453 = vpop.f32.mrb[0].mxu0
      %v454 = vadd.f32 0.0, %v453
      %v455 = vpop.f32.mrb[0].mxu0
      %456 = vmatprep.mubr.f32.mxu0 0.0
      %457 = vmatmul.mubr.f32.gmra.mrb[0].mxu0 %v323
      %v458 = vpop.f32.mrb[0].mxu0
      %v459 = vadd.f32 0.0, %v458
      %v460 = vpop.f32.mrb[0].mxu0
      %461 = vmatprep.mubr.f32.mxu0 0.0
      %462 = vmatmul.mubr.f32.gmra.mrb[0].mxu0 %v326
      %v463 = vpop.f32.mrb[0].mxu0
      %v464 = vadd.f32 0.0, %v463
      %v465 = vpop.f32.mrb[0].mxu0
      %466 = vmatprep.mubr.f32.mxu0 0.0
      %467 = vmatmul.mubr.f32.gmra.mrb[0].mxu0 %v329
      %v468 = vpop.f32.mrb[0].mxu0
      %v469 = vadd.f32 0.0, %v468
      %v470 = vpop.f32.mrb[0].mxu0
      %471 = vmatprep.mubr.f32.mxu0 0.0
      %472 = vmatmul.mubr.f32.gmra.mrb[0].mxu0 %v332
      %v473 = vpop.f32.mrb[0].mxu0
      %v474 = vadd.f32 0.0, %v473
      %v475 = vpop.f32.mrb[0].mxu0
      %476 = vmatprep.mubr.f32.mxu0 0.0
      %477 = vmatmul.mubr.f32.gmra.mrb[0].mxu0 %v335
      %v478 = vpop.f32.mrb[0].mxu0
      %v479 = vadd.f32 0.0, %v478
      %v480 = vpop.f32.mrb[0].mxu0
      %481 = vdwg.mxu0
      %v482 = vadd.f32 %v254, %v404
      %v483 = vadd.f32 %v255, %v409
      %v484 = vadd.f32 %v256, %v414
      %v485 = vadd.f32 %v257, %v419
      %v486 = vadd.f32 %v258, %v424
      %v487 = vadd.f32 %v259, %v429
      %v488 = vadd.f32 %v260, %v434
      %v489 = vadd.f32 %v261, %v439
      %v490 = vadd.f32 %v262, %v444
      %v491 = vadd.f32 %v263, %v449
      %v492 = vadd.f32 %v264, %v454
      %v493 = vadd.f32 %v265, %v459
      %v494 = vadd.f32 %v266, %v464
      %v495 = vadd.f32 %v267, %v469
      %v496 = vadd.f32 %v268, %v474
      %v497 = vadd.f32 %v269, %v479
      %vm498 = vcmask 162816
      %499 = vst.msk [vmem:[#allocation2] sm:$0xff] %vm498, %v482
      %500 = vst.msk [vmem:[#allocation2 + $0x8] sm:$0xff] %vm498, %v483
      %501 = vst.msk [vmem:[#allocation2 + $0x10] sm:$0xff] %vm498, %v484
      %502 = vst.msk [vmem:[#allocation2 + $0x18] sm:$0xff] %vm498, %v485
      %503 = vst.msk [vmem:[#allocation2 + $0x20] sm:$0xff] %vm498, %v486
      %504 = vst.msk [vmem:[#allocation2 + $0x28] sm:$0xff] %vm498, %v487
      %505 = vst.msk [vmem:[#allocation2 + $0x30] sm:$0xff] %vm498, %v488
      %506 = vst.msk [vmem:[#allocation2 + $0x38] sm:$0xff] %vm498, %v489
      %507 = vst.msk [vmem:[#allocation2 + $0x40] sm:$0xff] %vm498, %v490
      %508 = vst.msk [vmem:[#allocation2 + $0x48] sm:$0xff] %vm498, %v491
      %509 = vst.msk [vmem:[#allocation2 + $0x50] sm:$0xff] %vm498, %v492
      %510 = vst.msk [vmem:[#allocation2 + $0x58] sm:$0xff] %vm498, %v493
      %511 = vst.msk [vmem:[#allocation2 + $0x60] sm:$0xff] %vm498, %v494
      %512 = vst.msk [vmem:[#allocation2 + $0x68] sm:$0xff] %vm498, %v495
      %513 = vst.msk [vmem:[#allocation2 + $0x70] sm:$0xff] %vm498, %v496
      %514 = vst.msk [vmem:[#allocation2 + $0x78] sm:$0xff] %vm498, %v497
      // Predicated region
      $region33: #{tpu_custom_call.1} parent=27 // pred_check
        %p515 = pneg %p233
      $region34: #{tpu_custom_call.1} parent=27 // pred_check_branch
        %517 = sbr.rel (%p515) target = $region36
      $region35: #{tpu_custom_call.1} parent=27 // pred_region
        %v518 = vld [vmem:[#allocation2] sm:$0xff]
        %v519 = vld [vmem:[#allocation2 + $0x8] sm:$0xff]
        %v520 = vld [vmem:[#allocation2 + $0x10] sm:$0xff]
        %v521 = vld [vmem:[#allocation2 + $0x18] sm:$0xff]
        %v522 = vld [vmem:[#allocation2 + $0x20] sm:$0xff]
        %v523 = vld [vmem:[#allocation2 + $0x28] sm:$0xff]
        %v524 = vld [vmem:[#allocation2 + $0x30] sm:$0xff]
        %v525 = vld [vmem:[#allocation2 + $0x38] sm:$0xff]
        %v526 = vld [vmem:[#allocation2 + $0x40] sm:$0xff]
        %v527 = vld [vmem:[#allocation2 + $0x48] sm:$0xff]
        %v528 = vld [vmem:[#allocation2 + $0x50] sm:$0xff]
        %v529 = vld [vmem:[#allocation2 + $0x58] sm:$0xff]
        %v530 = vld [vmem:[#allocation2 + $0x60] sm:$0xff]
        %v531 = vld [vmem:[#allocation2 + $0x68] sm:$0xff]
        %v532 = vld [vmem:[#allocation2 + $0x70] sm:$0xff]
        %v533 = vld [vmem:[#allocation2 + $0x78] sm:$0xff]
        %534 = vst.msk [vmem:[%s225] sm:$0xff] %vm288, %v518
        %535 = vst.msk [vmem:[%s225 + $0x8] sm:$0xff] %vm288, %v519
        %536 = vst.msk [vmem:[%s225 + $0x10] sm:$0xff] %vm288, %v520
        %537 = vst.msk [vmem:[%s225 + $0x18] sm:$0xff] %vm288, %v521
        %538 = vst.msk [vmem:[%s225 + $0x20] sm:$0xff] %vm288, %v522
        %539 = vst.msk [vmem:[%s225 + $0x28] sm:$0xff] %vm288, %v523
        %540 = vst.msk [vmem:[%s225 + $0x30] sm:$0xff] %vm288, %v524
        %541 = vst.msk [vmem:[%s225 + $0x38] sm:$0xff] %vm288, %v525
        %542 = vst.msk [vmem:[%s225 + $0x40] sm:$0xff] %vm288, %v526
        %543 = vst.msk [vmem:[%s225 + $0x48] sm:$0xff] %vm288, %v527
        %544 = vst.msk [vmem:[%s225 + $0x50] sm:$0xff] %vm288, %v528
        %545 = vst.msk [vmem:[%s225 + $0x58] sm:$0xff] %vm288, %v529
        %546 = vst.msk [vmem:[%s225 + $0x60] sm:$0xff] %vm288, %v530
        %547 = vst.msk [vmem:[%s225 + $0x68] sm:$0xff] %vm288, %v531
        %548 = vst.msk [vmem:[%s225 + $0x70] sm:$0xff] %vm288, %v532
        %549 = vst.msk [vmem:[%s225 + $0x78] sm:$0xff] %vm288, %v533
        %v550 = vld [vmem:[#allocation2] sm:$0xff]
        %v551 = vld [vmem:[#allocation2 + $0x8] sm:$0xff]
        %v552 = vld [vmem:[#allocation2 + $0x10] sm:$0xff]
        %v553 = vld [vmem:[#allocation2 + $0x18] sm:$0xff]
        %v554 = vld [vmem:[#allocation2 + $0x20] sm:$0xff]
        %v555 = vld [vmem:[#allocation2 + $0x28] sm:$0xff]
        %v556 = vld [vmem:[#allocation2 + $0x30] sm:$0xff]
        %v557 = vld [vmem:[#allocation2 + $0x38] sm:$0xff]
        %v558 = vld [vmem:[#allocation2 + $0x40] sm:$0xff]
        %v559 = vld [vmem:[#allocation2 + $0x48] sm:$0xff]
        %v560 = vld [vmem:[#allocation2 + $0x50] sm:$0xff]
        %v561 = vld [vmem:[#allocation2 + $0x58] sm:$0xff]
        %v562 = vld [vmem:[#allocation2 + $0x60] sm:$0xff]
        %v563 = vld [vmem:[#allocation2 + $0x68] sm:$0xff]
        %v564 = vld [vmem:[#allocation2 + $0x70] sm:$0xff]
        %v565 = vld [vmem:[#allocation2 + $0x78] sm:$0xff]
        %582 = vrot.lane.b32.xlu0 %v550, 112
        %v583 = vpop.permute.xlu0 %582
        %584 = vrot.lane.b32.xlu0 %v551, 112
        %v585 = vpop.permute.xlu0 %584
        %586 = vrot.lane.b32.xlu0 %v552, 112
        %v587 = vpop.permute.xlu0 %586
        %588 = vrot.lane.b32.xlu0 %v553, 112
        %v589 = vpop.permute.xlu0 %588
        %590 = vrot.lane.b32.xlu0 %v554, 112
        %v591 = vpop.permute.xlu0 %590
        %592 = vrot.lane.b32.xlu0 %v555, 112
        %v593 = vpop.permute.xlu0 %592
        %594 = vrot.lane.b32.xlu0 %v556, 112
        %v595 = vpop.permute.xlu0 %594
        %596 = vrot.lane.b32.xlu0 %v557, 112
        %v597 = vpop.permute.xlu0 %596
        %598 = vrot.lane.b32.xlu0 %v558, 112
        %v599 = vpop.permute.xlu0 %598
        %600 = vrot.lane.b32.xlu0 %v559, 112
        %v601 = vpop.permute.xlu0 %600
        %602 = vrot.lane.b32.xlu0 %v560, 112
        %v603 = vpop.permute.xlu0 %602
        %604 = vrot.lane.b32.xlu0 %v561, 112
        %v605 = vpop.permute.xlu0 %604
        %606 = vrot.lane.b32.xlu0 %v562, 112
        %v607 = vpop.permute.xlu0 %606
        %608 = vrot.lane.b32.xlu0 %v563, 112
        %v609 = vpop.permute.xlu0 %608
        %610 = vrot.lane.b32.xlu0 %v564, 112
        %v611 = vpop.permute.xlu0 %610
        %612 = vrot.lane.b32.xlu0 %v565, 112
        %v613 = vpop.permute.xlu0 %612
        %vm630 = vcmask 31744
        %631 = vst.msk [vmem:[%s231] sm:$0xff] %vm630, %v583
        %632 = vst.msk [vmem:[%s231 + $0x8] sm:$0xff] %vm630, %v585
        %633 = vst.msk [vmem:[%s231 + $0x10] sm:$0xff] %vm630, %v587
        %634 = vst.msk [vmem:[%s231 + $0x18] sm:$0xff] %vm630, %v589
        %635 = vst.msk [vmem:[%s231 + $0x20] sm:$0xff] %vm630, %v591
        %636 = vst.msk [vmem:[%s231 + $0x28] sm:$0xff] %vm630, %v593
        %637 = vst.msk [vmem:[%s231 + $0x30] sm:$0xff] %vm630, %v595
        %638 = vst.msk [vmem:[%s231 + $0x38] sm:$0xff] %vm630, %v597
        %639 = vst.msk [vmem:[%s231 + $0x40] sm:$0xff] %vm630, %v599
        %640 = vst.msk [vmem:[%s231 + $0x48] sm:$0xff] %vm630, %v601
        %641 = vst.msk [vmem:[%s231 + $0x50] sm:$0xff] %vm630, %v603
        %642 = vst.msk [vmem:[%s231 + $0x58] sm:$0xff] %vm630, %v605
        %643 = vst.msk [vmem:[%s231 + $0x60] sm:$0xff] %vm630, %v607
        %644 = vst.msk [vmem:[%s231 + $0x68] sm:$0xff] %vm630, %v609
        %645 = vst.msk [vmem:[%s231 + $0x70] sm:$0xff] %vm630, %v611
        %646 = vst.msk [vmem:[%s231 + $0x78] sm:$0xff] %vm630, %v613
      $region36: #{tpu_custom_call.1} parent=27 // pred_fallthru
        _
      %s647 = smul.u32 16, %s19
      %p648 = scmp.lt.s32.totalorder %s647, 47
      %s649 = scalar_select %p648, %s647, 47
      %s650 = smul.addr %s649, 8
      %s651 = scalar_lea.vmem %s2, %s650
      %s652 = smul.u32 16, %s19
      %p653 = scmp.lt.s32.totalorder %s652, 47
      %s654 = scalar_select %p653, %s652, 47
      %s655 = smul.addr %s654, 8
      %s656 = scalar_lea.vmem %s3, %s655
      // Predicated region
      $region37: #{tpu_custom_call.1} parent=27 // pred_check
        %p657 = pneg %p99
      $region38: #{tpu_custom_call.1} parent=27 // pred_check_branch
        %659 = sbr.rel (%p657) target = $region40
      $region39: #{tpu_custom_call.1} parent=27 // pred_region
        %s660 = smul.u32 16, %s19
      $region40: #{tpu_custom_call.1} parent=27 // pred_fallthru
        _
      // Predicated region
      $region41: #{tpu_custom_call.1} parent=27 // pred_check
        %p661 = pneg %p125
      $region42: #{tpu_custom_call.1} parent=27 // pred_check_branch
        %663 = sbr.rel (%p661) target = $region44
      $region43: #{tpu_custom_call.1} parent=27 // pred_region
        %s664 = smul.u32 16, %s19
      $region44: #{tpu_custom_call.1} parent=27 // pred_fallthru
        _
    $region28: #{tpu_custom_call.1} parent=5 // pred_fallthru
      _
    %p665 = scmp.le.s32.totalorder 2, %s10
    // Predicated region
    $region45: #{tpu_custom_call.1} parent=5 // pred_check
      %p666 = pneg %p665
    $region46: #{tpu_custom_call.1} parent=5 // pred_check_branch
      %668 = sbr.rel (%p666) target = $region48
    $region47: #{tpu_custom_call.1} parent=5 // pred_region
      %s669 = ssub.s32 %s10, 2
      // Predicated region
      $region49: #{tpu_custom_call.1} parent=47 // pred_check
        %p670 = pneg %p105
      $region50: #{tpu_custom_call.1} parent=47 // pred_check_branch
        %672 = sbr.rel (%p670) target = $region52
      $region51: #{tpu_custom_call.1} parent=47 // pred_region
        %s673 = smul.u32 16, %s21
        %p674 = scmp.lt.s32.totalorder %s673, 47
        %s675 = scalar_select %p674, %s673, 47
        %s676 = smul.addr %s675, 8
        %s677 = scalar_lea.vmem %s2, %s676
      $region52: #{tpu_custom_call.1} parent=47 // pred_fallthru
        _
      // Predicated region
      $region53: #{tpu_custom_call.1} parent=47 // pred_check
        %p678 = pneg %p131
      $region54: #{tpu_custom_call.1} parent=47 // pred_check_branch
        %680 = sbr.rel (%p678) target = $region56
      $region55: #{tpu_custom_call.1} parent=47 // pred_region
        %s681 = smul.u32 16, %s21
        %p682 = scmp.lt.s32.totalorder %s681, 47
        %s683 = scalar_select %p682, %s681, 47
        %s684 = smul.addr %s683, 8
        %s685 = scalar_lea.vmem %s3, %s684
      $region56: #{tpu_custom_call.1} parent=47 // pred_fallthru
        _
    $region48: #{tpu_custom_call.1} parent=5 // pred_fallthru
      _
  $region6: #{tpu_custom_call.1} parent=0 // loop_footer
    %s14 = sadd.s32 1, %s10
  $region7: #{tpu_custom_call.1} parent=0 // loop_footer_branch
    %9 = sbr.rel target = $region3
  $region8: #{tpu_custom_call.1} parent=0 // loop_exit
    _

</llo_original>
